<compile_context>
chip_gen: v7x
topology: tpu7x:2x2x1
jax: 0.10.0
libtpu: 0.0.40
codegen_flags: <defaults>
</compile_context>

<pallas_src>
import functools

import jax
import jax.numpy as jnp
from jax.experimental import pallas as pl
from jax.experimental.pallas import tpu as pltpu


def _combo_kernel(p_ref, t_ref, out_ref, acc_bf, acc_inter, acc_psum, *,
                  n_elem):
    b = pl.program_id(1)
    m = pl.program_id(2)
    nb = pl.num_programs(1)
    nm = pl.num_programs(2)

    # Re-zero the per-channel accumulators at the first (b, m) tile of a
    # channel.  (B and M-tile axes are the trailing "arbitrary" axes.)
    @pl.when((b == 0) & (m == 0))
    def _():
        acc_bf[...] = jnp.zeros_like(acc_bf)
        acc_inter[...] = jnp.zeros_like(acc_inter)
        acc_psum[...] = jnp.zeros_like(acc_psum)

    p = p_ref[...].reshape(-1, 128).astype(jnp.float32)   # (TM, 128)
    t = t_ref[...].reshape(-1, 128).astype(jnp.float32)

    # binary_cross_entropy (no logits); PyTorch clamps log() at -100.
    # NOTE: kept the general 2-log + exp formulation so soft (non-binary)
    # targets retain exact module semantics.  For guaranteed-binary labels,
    # pt = where(t > 0.5, p, 1 - p) would drop transcendentals 3 -> 1.
    log_p = jnp.maximum(jnp.log(p), -100.0)
    log_1mp = jnp.maximum(jnp.log(1.0 - p), -100.0)
    bce = -(t * log_p + (1.0 - t) * log_1mp)

    # FocalLoss(alpha=1, gamma=2, logits=False, reduce=True)
    pt = jnp.exp(-bce)
    one_minus_pt = 1.0 - pt
    focal = one_minus_pt * one_minus_pt * bce

    rows = acc_bf.shape[0]

    def vsum(x):
        # (TM, 128) -> (rows, 128) with pure vreg adds (VALU only); the
        # cross-lane XLU collapse is deferred to the per-channel finalize.
        return jnp.sum(x.reshape(-1, rows, 128), axis=0)

    # Three fused partial sums (bce & focal share the same mean denominator,
    # and sum(p) + sum(t) == sum(p + t)).
    acc_bf[...] += vsum(bce + focal)
    acc_inter[...] += vsum(p * t)
    acc_psum[...] += vsum(p + t)

    # Finalize once per channel: single XLU collapse + dice ratio + mean.
    @pl.when((b == nb - 1) & (m == nm - 1))
    def _():
        s_bf = jnp.sum(acc_bf[...])        # sum(bce) + sum(focal)
        s_inter = jnp.sum(acc_inter[...])  # sum(p * t)
        s_psum = jnp.sum(acc_psum[...])    # sum(p) + sum(t)
        smooth = jnp.float32(1e-9)
        dsc = (2.0 * s_inter + smooth) / (s_psum + smooth)
        loss_c = s_bf / jnp.float32(n_elem) + (1.0 - dsc)
        out_ref[...] = jnp.full(out_ref.shape, loss_c, dtype=jnp.float32)


def _pick_tile_m(m, tmax=2048):
    """Largest divisor of m that is <= tmax, preferring multiples of 8.

    tmax=2048 sublanes -> 1 MiB per f32 input tile; with 2 inputs x 2 pipeline
    buffers that is ~4 MiB of VMEM, well within v5e/v6e/v7x budgets.
    """
    if m <= tmax:
        return m
    for tm in range(tmax, 0, -1):
        if m % tm == 0 and tm % 8 == 0:
            return tm
    for tm in range(tmax, 0, -1):
        if m % tm == 0:
            return tm
    return 1


def combo_loss(output, y_true):
    """output, y_true: (B, C, H, W) float probabilities / targets."""
    B, C, H, W = output.shape
    hw = H * W
    assert hw % 128 == 0, "H*W must be a multiple of 128"
    M = hw // 128
    TM = _pick_tile_m(M)
    num_m = M // TM
    acc_rows = 8 if TM % 8 == 0 else TM

    # Free reshapes (H*W contiguous) -- no transpose, no HBM copy.
    p = output.reshape(B, C, M, 128)
    t = y_true.reshape(B, C, M, 128)

    n_elem = float(B * hw)   # true per-channel element count (trace-time const)

    kernel = functools.partial(_combo_kernel, n_elem=n_elem)

    out = pl.pallas_call(
        kernel,
        out_shape=jax.ShapeDtypeStruct((C, 8, 128), jnp.float32),
        grid_spec=pltpu.PrefetchScalarGridSpec(
            num_scalar_prefetch=0,
            grid=(C, B, num_m),
            in_specs=[
                pl.BlockSpec((1, 1, TM, 128), lambda c, b, m: (b, c, m, 0)),
                pl.BlockSpec((1, 1, TM, 128), lambda c, b, m: (b, c, m, 0)),
            ],
            out_specs=pl.BlockSpec((1, 8, 128), lambda c, b, m: (c, 0, 0)),
            scratch_shapes=[
                pltpu.VMEM((acc_rows, 128), jnp.float32),  # sum(bce + focal)
                pltpu.VMEM((acc_rows, 128), jnp.float32),  # sum(p * t)
                pltpu.VMEM((acc_rows, 128), jnp.float32),  # sum(p + t)
            ],
        ),
        compiler_params=pltpu.CompilerParams(
            dimension_semantics=("parallel", "arbitrary", "arbitrary")),
    )(p, t)

    per_channel = out[:, 0, 0]                 # (C,)
    return jnp.sum(per_channel) / jnp.float32(C)


def _combo_loss_ref(output, y_true):
    """Pure-JAX reference matching the PyTorch module semantics."""
    B, C, H, W = output.shape
    total = 0.0
    smooth = 1e-9
    for c in range(C):
        p = output[:, c].reshape(-1).astype(jnp.float32)
        t = y_true[:, c].reshape(-1).astype(jnp.float32)
        bce = -(t * jnp.maximum(jnp.log(p), -100.0)
                + (1.0 - t) * jnp.maximum(jnp.log(1.0 - p), -100.0))
        pt = jnp.exp(-bce)
        focal = (1.0 - pt) ** 2 * bce
        loss_fl = jnp.mean(focal)
        loss_ce = jnp.mean(bce)
        inter = jnp.sum(p * t)
        dsc = (2.0 * inter + smooth) / (jnp.sum(p) + jnp.sum(t) + smooth)
        total = total + loss_ce + loss_fl + (1.0 - dsc)
    return total / C


if __name__ == "__main__":
    key = jax.random.PRNGKey(0)
    k1, k2 = jax.random.split(key)

    B, C, H, W = 2, 4, 16, 16
    # predictions are probabilities in (0, 1); targets are binary floats
    output = jax.random.uniform(k1, (B, C, H, W), jnp.float32,
                                minval=0.01, maxval=0.99)
    y_true = (jax.random.uniform(k2, (B, C, H, W), jnp.float32) > 0.5
              ).astype(jnp.float32)

    loss = combo_loss(output, y_true)
    jax.block_until_ready(loss)

    ref = _combo_loss_ref(output, y_true)
    assert jnp.allclose(loss, ref, rtol=1e-5, atol=1e-5), (loss, ref)

    print("KERNEL_OK")
</pallas_src>

<mosaic_0001>
module attributes {stable_mosaic.version = 11 : i64} {
  func.func @_combo_kernel(%arg0: i32, %arg1: i32, %arg2: i32, %arg3: memref<1x1x2x128xf32, #tpu.memory_space<vmem>>, %arg4: memref<1x1x2x128xf32, #tpu.memory_space<vmem>>, %arg5: memref<1x8x128xf32, #tpu.memory_space<vmem>>, %arg6: memref<2x128xf32, #tpu.memory_space<vmem>>, %arg7: memref<2x128xf32, #tpu.memory_space<vmem>>, %arg8: memref<2x128xf32, #tpu.memory_space<vmem>>) attributes {dimension_semantics = [#tpu.dimension_semantics<parallel>, #tpu.dimension_semantics<arbitrary>, #tpu.dimension_semantics<arbitrary>], iteration_bounds = array<i64: 4, 2, 1>, scalar_prefetch = 0 : i64, scratch_operands = 3 : i64, tpu.core_type = #tpu.core_type<tc>, window_params = [{transform_indices = @transform_0, window_bounds = array<i64: 1, 1, 2, 128>}, {transform_indices = @transform_1, window_bounds = array<i64: 1, 1, 2, 128>}, {transform_indices = @transform_2, window_bounds = array<i64: 1, 8, 128>}]} {
    %c0_i32 = arith.constant 0 : i32
    %0 = arith.cmpi eq, %arg1, %c0_i32 : i32
    %c0_i32_0 = arith.constant 0 : i32
    %1 = arith.cmpi eq, %arg2, %c0_i32_0 : i32
    %2 = arith.andi %0, %1 : i1
    %3 = arith.extui %2 : i1 to i32
    %c0_i32_1 = arith.constant 0 : i32
    %4 = arith.cmpi ne, %3, %c0_i32_1 : i32
    scf.if %4 {
      %cst_32 = arith.constant 0.000000e+00 : f32
      %54 = vector.broadcast %cst_32 : f32 to vector<2x128xf32>
      %c0_33 = arith.constant 0 : index
      %c0_34 = arith.constant 0 : index
      %55 = vector.load %arg6[%c0_33, %c0_34] : memref<2x128xf32, #tpu.memory_space<vmem>>, vector<2x128xf32>
      tpu.vector_store %arg6[%c0_33, %c0_34], %54 {strides = array<i32>} : memref<2x128xf32, #tpu.memory_space<vmem>>, vector<2x128xf32>,
      %cst_35 = arith.constant 0.000000e+00 : f32
      %56 = vector.broadcast %cst_35 : f32 to vector<2x128xf32>
      %c0_36 = arith.constant 0 : index
      %c0_37 = arith.constant 0 : index
      %57 = vector.load %arg7[%c0_36, %c0_37] : memref<2x128xf32, #tpu.memory_space<vmem>>, vector<2x128xf32>
      tpu.vector_store %arg7[%c0_36, %c0_37], %56 {strides = array<i32>} : memref<2x128xf32, #tpu.memory_space<vmem>>, vector<2x128xf32>,
      %cst_38 = arith.constant 0.000000e+00 : f32
      %58 = vector.broadcast %cst_38 : f32 to vector<2x128xf32>
      %c0_39 = arith.constant 0 : index
      %c0_40 = arith.constant 0 : index
      %59 = vector.load %arg8[%c0_39, %c0_40] : memref<2x128xf32, #tpu.memory_space<vmem>>, vector<2x128xf32>
      tpu.vector_store %arg8[%c0_39, %c0_40], %58 {strides = array<i32>} : memref<2x128xf32, #tpu.memory_space<vmem>>, vector<2x128xf32>,
    } else {
    }
    %c0 = arith.constant 0 : index
    %c0_2 = arith.constant 0 : index
    %c0_3 = arith.constant 0 : index
    %c0_4 = arith.constant 0 : index
    %5 = vector.load %arg3[%c0, %c0_2, %c0_3, %c0_4] : memref<1x1x2x128xf32, #tpu.memory_space<vmem>>, vector<1x1x2x128xf32>
    %6 = vector.shape_cast %5 : vector<1x1x2x128xf32> to vector<2x128xf32>
    %c0_5 = arith.constant 0 : index
    %c0_6 = arith.constant 0 : index
    %c0_7 = arith.constant 0 : index
    %c0_8 = arith.constant 0 : index
    %7 = vector.load %arg4[%c0_5, %c0_6, %c0_7, %c0_8] : memref<1x1x2x128xf32, #tpu.memory_space<vmem>>, vector<1x1x2x128xf32>
    %8 = vector.shape_cast %7 : vector<1x1x2x128xf32> to vector<2x128xf32>
    %9 = math.log %6 : vector<2x128xf32>
    %cst = arith.constant -1.000000e+02 : f32
    %10 = vector.broadcast %cst : f32 to vector<2x128xf32>
    %11 = arith.maximumf %9, %10 : vector<2x128xf32>
    %cst_9 = arith.constant 1.000000e+00 : f32
    %12 = vector.broadcast %cst_9 : f32 to vector<2x128xf32>
    %13 = arith.subf %12, %6 : vector<2x128xf32>
    %14 = math.log %13 : vector<2x128xf32>
    %cst_10 = arith.constant -1.000000e+02 : f32
    %15 = vector.broadcast %cst_10 : f32 to vector<2x128xf32>
    %16 = arith.maximumf %14, %15 : vector<2x128xf32>
    %17 = arith.mulf %8, %11 : vector<2x128xf32>
    %cst_11 = arith.constant 1.000000e+00 : f32
    %18 = vector.broadcast %cst_11 : f32 to vector<2x128xf32>
    %19 = arith.subf %18, %8 : vector<2x128xf32>
    %20 = arith.mulf %19, %16 : vector<2x128xf32>
    %21 = arith.addf %17, %20 : vector<2x128xf32>
    %cst_12 = arith.constant 0.000000e+00 : f32
    %22 = vector.broadcast %cst_12 : f32 to vector<2x128xf32>
    %23 = arith.subf %22, %21 : vector<2x128xf32>
    %cst_13 = arith.constant 0.000000e+00 : f32
    %24 = vector.broadcast %cst_13 : f32 to vector<2x128xf32>
    %25 = arith.subf %24, %23 : vector<2x128xf32>
    %26 = math.exp %25 : vector<2x128xf32>
    %cst_14 = arith.constant 1.000000e+00 : f32
    %27 = vector.broadcast %cst_14 : f32 to vector<2x128xf32>
    %28 = arith.subf %27, %26 : vector<2x128xf32>
    %29 = arith.mulf %28, %28 : vector<2x128xf32>
    %30 = arith.mulf %29, %23 : vector<2x128xf32>
    %c0_15 = arith.constant 0 : index
    %c0_16 = arith.constant 0 : index
    %31 = vector.load %arg6[%c0_15, %c0_16] : memref<2x128xf32, #tpu.memory_space<vmem>>, vector<2x128xf32>
    %32 = arith.addf %23, %30 : vector<2x128xf32>
    %33 = vector.shape_cast %32 : vector<2x128xf32> to vector<1x2x128xf32>
    %cst_17 = arith.constant dense<0.000000e+00> : vector<2x128xf32>
    %34 = vector.multi_reduction <add>, %33, %cst_17 [0] : vector<1x2x128xf32> to vector<2x128xf32>
    %35 = arith.addf %31, %34 : vector<2x128xf32>
    %c0_18 = arith.constant 0 : index
    %c0_19 = arith.constant 0 : index
    %36 = vector.load %arg6[%c0_18, %c0_19] : memref<2x128xf32, #tpu.memory_space<vmem>>, vector<2x128xf32>
    tpu.vector_store %arg6[%c0_18, %c0_19], %35 {strides = array<i32>} : memref<2x128xf32, #tpu.memory_space<vmem>>, vector<2x128xf32>,
    %c0_20 = arith.constant 0 : index
    %c0_21 = arith.constant 0 : index
    %37 = vector.load %arg7[%c0_20, %c0_21] : memref<2x128xf32, #tpu.memory_space<vmem>>, vector<2x128xf32>
    %38 = arith.mulf %6, %8 : vector<2x128xf32>
    %39 = vector.shape_cast %38 : vector<2x128xf32> to vector<1x2x128xf32>
    %cst_22 = arith.constant dense<0.000000e+00> : vector<2x128xf32>
    %40 = vector.multi_reduction <add>, %39, %cst_22 [0] : vector<1x2x128xf32> to vector<2x128xf32>
    %41 = arith.addf %37, %40 : vector<2x128xf32>
    %c0_23 = arith.constant 0 : index
    %c0_24 = arith.constant 0 : index
    %42 = vector.load %arg7[%c0_23, %c0_24] : memref<2x128xf32, #tpu.memory_space<vmem>>, vector<2x128xf32>
    tpu.vector_store %arg7[%c0_23, %c0_24], %41 {strides = array<i32>} : memref<2x128xf32, #tpu.memory_space<vmem>>, vector<2x128xf32>,
    %c0_25 = arith.constant 0 : index
    %c0_26 = arith.constant 0 : index
    %43 = vector.load %arg8[%c0_25, %c0_26] : memref<2x128xf32, #tpu.memory_space<vmem>>, vector<2x128xf32>
    %44 = arith.addf %6, %8 : vector<2x128xf32>
    %45 = vector.shape_cast %44 : vector<2x128xf32> to vector<1x2x128xf32>
    %cst_27 = arith.constant dense<0.000000e+00> : vector<2x128xf32>
    %46 = vector.multi_reduction <add>, %45, %cst_27 [0] : vector<1x2x128xf32> to vector<2x128xf32>
    %47 = arith.addf %43, %46 : vector<2x128xf32>
    %c0_28 = arith.constant 0 : index
    %c0_29 = arith.constant 0 : index
    %48 = vector.load %arg8[%c0_28, %c0_29] : memref<2x128xf32, #tpu.memory_space<vmem>>, vector<2x128xf32>
    tpu.vector_store %arg8[%c0_28, %c0_29], %47 {strides = array<i32>} : memref<2x128xf32, #tpu.memory_space<vmem>>, vector<2x128xf32>,
    %c1_i32 = arith.constant 1 : i32
    %49 = arith.cmpi eq, %arg1, %c1_i32 : i32
    %c0_i32_30 = arith.constant 0 : i32
    %50 = arith.cmpi eq, %arg2, %c0_i32_30 : i32
    %51 = arith.andi %49, %50 : i1
    %52 = arith.extui %51 : i1 to i32
    %c0_i32_31 = arith.constant 0 : i32
    %53 = arith.cmpi ne, %52, %c0_i32_31 : i32
    scf.if %53 {
      %c0_32 = arith.constant 0 : index
      %c0_33 = arith.constant 0 : index
      %54 = vector.load %arg6[%c0_32, %c0_33] : memref<2x128xf32, #tpu.memory_space<vmem>>, vector<2x128xf32>
      %55 = vector.shape_cast %54 : vector<2x128xf32> to vector<1x2x128xf32>
      %cst_34 = arith.constant dense<0.000000e+00> : vector<1xf32>
      %56 = vector.multi_reduction <add>, %55, %cst_34 [1, 2] : vector<1x2x128xf32> to vector<1xf32>
      %57 = vector.shape_cast %56 : vector<1xf32> to vector<1x1x1xf32>
      %58 = vector.extract %57[0, 0, 0] : f32 from vector<1x1x1xf32>
      %c0_35 = arith.constant 0 : index
      %c0_36 = arith.constant 0 : index
      %59 = vector.load %arg7[%c0_35, %c0_36] : memref<2x128xf32, #tpu.memory_space<vmem>>, vector<2x128xf32>
      %60 = vector.shape_cast %59 : vector<2x128xf32> to vector<1x2x128xf32>
      %cst_37 = arith.constant dense<0.000000e+00> : vector<1xf32>
      %61 = vector.multi_reduction <add>, %60, %cst_37 [1, 2] : vector<1x2x128xf32> to vector<1xf32>
      %62 = vector.shape_cast %61 : vector<1xf32> to vector<1x1x1xf32>
      %63 = vector.extract %62[0, 0, 0] : f32 from vector<1x1x1xf32>
      %c0_38 = arith.constant 0 : index
      %c0_39 = arith.constant 0 : index
      %64 = vector.load %arg8[%c0_38, %c0_39] : memref<2x128xf32, #tpu.memory_space<vmem>>, vector<2x128xf32>
      %65 = vector.shape_cast %64 : vector<2x128xf32> to vector<1x2x128xf32>
      %cst_40 = arith.constant dense<0.000000e+00> : vector<1xf32>
      %66 = vector.multi_reduction <add>, %65, %cst_40 [1, 2] : vector<1x2x128xf32> to vector<1xf32>
      %67 = vector.shape_cast %66 : vector<1xf32> to vector<1x1x1xf32>
      %68 = vector.extract %67[0, 0, 0] : f32 from vector<1x1x1xf32>
      %cst_41 = arith.constant 2.000000e+00 : f32
      %69 = arith.mulf %cst_41, %63 : f32
      %cst_42 = arith.constant 9.99999971E-10 : f32
      %70 = arith.addf %69, %cst_42 : f32
      %cst_43 = arith.constant 9.99999971E-10 : f32
      %71 = arith.addf %68, %cst_43 : f32
      %72 = arith.divf %70, %71 : f32
      %cst_44 = arith.constant 5.120000e+02 : f32
      %73 = arith.divf %58, %cst_44 : f32
      %cst_45 = arith.constant 1.000000e+00 : f32
      %74 = arith.subf %cst_45, %72 : f32
      %75 = arith.addf %73, %74 : f32
      %76 = vector.broadcast %75 : f32 to vector<1x8x128xf32>
      %c0_46 = arith.constant 0 : index
      %c0_47 = arith.constant 0 : index
      %c0_48 = arith.constant 0 : index
      %77 = vector.load %arg5[%c0_46, %c0_47, %c0_48] : memref<1x8x128xf32, #tpu.memory_space<vmem>>, vector<1x8x128xf32>
      tpu.vector_store %arg5[%c0_46, %c0_47, %c0_48], %76 {strides = array<i32>} : memref<1x8x128xf32, #tpu.memory_space<vmem>>, vector<1x8x128xf32>,
    } else {
    }
    return
  }
  func.func @transform_0(%arg0: i32, %arg1: i32, %arg2: i32) -> (i32, i32, i32, i32) {
    %c0_i32 = arith.constant 0 : i32
    %c0_i32_0 = arith.constant 0 : i32
    return %arg1, %arg0, %arg2, %c0_i32 : i32, i32, i32, i32
  }
  func.func @transform_1(%arg0: i32, %arg1: i32, %arg2: i32) -> (i32, i32, i32, i32) {
    %c0_i32 = arith.constant 0 : i32
    %c0_i32_0 = arith.constant 0 : i32
    return %arg1, %arg0, %arg2, %c0_i32 : i32, i32, i32, i32
  }
  func.func @transform_2(%arg0: i32, %arg1: i32, %arg2: i32) -> (i32, i32, i32) {
    %c0_i32 = arith.constant 0 : i32
    %c0_i32_0 = arith.constant 0 : i32
    %c0_i32_1 = arith.constant 0 : i32
    return %arg0, %c0_i32, %c0_i32_0 : i32, i32, i32
  }
}

</mosaic_0001>

<llo_original>
// kernel: tpu_custom_call.1
$region0: #{tpu_custom_call.1}
  #allocation0 [shape = 'u32[]', space=smem, size = 0x4, offset = 0x4, fixed_abs, tag = 'smem constant byte address 0x4 - core index']
  #allocation1 [shape = 'u32[144,128]{1,0:T(1,128)}', space=vmem, size = 0x12000, scoped, tag = 'internal scratch']
  #allocation2 [shape = 'f32[2,128]{1,0:T(2,128)}', space=vmem, size = 0x400, scoped, tag = 'scratch operand']
  #allocation3 [shape = 'f32[2,128]{1,0:T(2,128)}', space=vmem, size = 0x400, scoped, tag = 'scratch operand']
  #allocation4 [shape = 'f32[2,128]{1,0:T(2,128)}', space=vmem, size = 0x400, scoped, tag = 'scratch operand']
  %s0 = inlined_call_operand.hbm [shape: f32[2,4,2,128], index: 0, kind: input, shape index: {}]
  %s1 = inlined_call_operand.hbm [shape: f32[2,4,2,128], index: 1, kind: input, shape index: {}]
  %s2 = inlined_call_operand.hbm [shape: f32[4,8,128], index: 2, kind: output, shape index: {}]
  %s3 = sld [smem:[#allocation0]]
  $region57: #{tpu_custom_call.1} parent=0
    _
  %s5 = ssub.s32 1, %s3
  %s6 = scalar_select 0, %s5, %s3
  $region1: #{tpu_custom_call.1} parent=0
    #allocation5 [shape = 'u8[2048]{0}', space=vmem, size = 0x800, scoped, tag = 'input window, operand 0']
    #allocation6 [shape = 's32[2]{0}', space=sflag, size = 0x8, scoped, tag = 'scoped memory for tpu_custom_call.1']
    #allocation7 [shape = 's32[2]{0}', space=sflag, size = 0x8, scoped, tag = 'scoped memory for tpu_custom_call.1']
    #allocation8 [shape = 'u8[2048]{0}', space=vmem, size = 0x800, scoped, tag = 'input window, operand 1']
    #allocation9 [shape = 's32[2]{0}', space=sflag, size = 0x8, scoped, tag = 'scoped memory for tpu_custom_call.1']
    #allocation10 [shape = 'u8[8192]{0}', space=vmem, size = 0x2000, scoped, tag = 'output window, operand 0']
    %7 = vsyncpa [#allocation6], 0
    %s8 = scalar_lea.sflag [#allocation6], 1
    %9 = vsyncpa %s8, 0
    %10 = vsyncpa [#allocation9], 0
    %s11 = scalar_lea.sflag [#allocation9], 1
    %12 = vsyncpa %s11, 0
    %13 = vsyncpa [#allocation7], 0
    %s14 = scalar_lea.sflag [#allocation7], 1
    %15 = vsyncpa %s14, 0
    loop: start=0, step=1, limit=10
    $region2: #{tpu_custom_call.1} parent=1 // loop_pre_header
      _
    $region3: #{tpu_custom_call.1} parent=1 // loop_header
      %s17 = sphi 0, %s21
      %p18 = scmp.ge.s32.totalorder %s17, 10
      %s24 = sphi 0, %s43
      %s25 = sphi 0, %s39
      %s26 = sphi 0, %s35
      %s27 = sphi 0, %s24
      %s28 = sphi 0, %s25
      %s29 = sphi 0, %s26
      %s30 = sphi 0, %s27
      %s31 = sphi 0, %s28
      %s32 = sphi 0, %s29
      %s50 = sphi 0, %s52
      %s53 = sphi 0, %s50
      %s54 = sphi 0, %s53
      %s70 = sphi 0, %s54
      %s80 = sphi 0, %s82
      %s83 = sphi 0, %s80
      %s84 = sphi 0, %s83
      %s100 = sphi 0, %s84
      %s106 = sphi 0, %s108
      %s109 = sphi 0, %s106
      %s110 = sphi 0, %s109
      %s126 = sphi 0, %s110
    $region4: #{tpu_custom_call.1} parent=1 // loop_header_branch
      %20 = sbr.rel (%p18) target = $region8
    $region5: #{tpu_custom_call.1} parent=1 // loop_body
      %s22 = ssub.s32 %s17, 1
      %s23 = ssub.s32 %s17, 2
      %s33 = sadd.s32 1, %s26
      %p34 = scmp.ge.s32.totalorder %s33, 1
      %s35 = scalar_select %p34, 0, %s33
      %s36 = sadd.s32 1, %s25
      %s37 = scalar_select %p34, %s36, %s25
      %p38 = scmp.ge.s32.totalorder %s37, 2
      %s39 = scalar_select %p38, 0, %s37
      %s40 = sadd.s32 1, %s24
      %s41 = scalar_select %p38, %s40, %s24
      %p42 = scmp.ge.s32.totalorder %s41, 4
      %s43 = scalar_select %p42, 0, %s41
      %s44 = ssub.s32 %s25, %s39
      %s45 = ssub.s32 %s24, %s43
      %s46 = sor.u32 %s44, %s45
      %s47 = ssub.s32 %s26, %s35
      %s48 = sor.u32 %s46, %s47
      %p49 = scmp.eq.s32.totalorder %s48, 0
      %s51 = sadd.s32 %s50, 1
      %s52 = scalar_select %p49, %s50, %s51
      %p55 = pneg %p49
      %p56 = scmp.eq.s32.totalorder %s17, 7
      %p57 = por %p55, %p56
      %p58 = scmp.ne.s32.totalorder %s50, %s53
      %p59 = scmp.eq.s32.totalorder %s17, 0
      %p60 = por %p58, %p59
      %p61 = scmp.ne.s32.totalorder %s50, %s53
      %p62 = scmp.eq.s32.totalorder %s22, 7
      %p63 = por %p61, %p62
      %p64 = scmp.ne.s32.totalorder %s53, %s54
      %p65 = scmp.eq.s32.totalorder %s22, 0
      %p66 = por %p64, %p65
      %p67 = scmp.ne.s32.totalorder %s53, %s54
      %p68 = scmp.eq.s32.totalorder %s23, 7
      %p69 = por %p67, %p68
      %p71 = scmp.ne.s32.totalorder %s54, %s70
      %p72 = scmp.eq.s32.totalorder %s23, 0
      %p73 = por %p71, %p72
      %s74 = ssub.s32 %s25, %s39
      %s75 = ssub.s32 %s24, %s43
      %s76 = sor.u32 %s74, %s75
      %s77 = ssub.s32 %s26, %s35
      %s78 = sor.u32 %s76, %s77
      %p79 = scmp.eq.s32.totalorder %s78, 0
      %s81 = sadd.s32 %s80, 1
      %s82 = scalar_select %p79, %s80, %s81
      %p85 = pneg %p79
      %p86 = scmp.eq.s32.totalorder %s17, 7
      %p87 = por %p85, %p86
      %p88 = scmp.ne.s32.totalorder %s80, %s83
      %p89 = scmp.eq.s32.totalorder %s17, 0
      %p90 = por %p88, %p89
      %p91 = scmp.ne.s32.totalorder %s80, %s83
      %p92 = scmp.eq.s32.totalorder %s22, 7
      %p93 = por %p91, %p92
      %p94 = scmp.ne.s32.totalorder %s83, %s84
      %p95 = scmp.eq.s32.totalorder %s22, 0
      %p96 = por %p94, %p95
      %p97 = scmp.ne.s32.totalorder %s83, %s84
      %p98 = scmp.eq.s32.totalorder %s23, 7
      %p99 = por %p97, %p98
      %p101 = scmp.ne.s32.totalorder %s84, %s100
      %p102 = scmp.eq.s32.totalorder %s23, 0
      %p103 = por %p101, %p102
      %s104 = ssub.s32 %s24, %s43
      %p105 = scmp.eq.s32.totalorder %s104, 0
      %s107 = sadd.s32 %s106, 1
      %s108 = scalar_select %p105, %s106, %s107
      %p111 = pneg %p105
      %p112 = scmp.eq.s32.totalorder %s17, 7
      %p113 = por %p111, %p112
      %p114 = scmp.ne.s32.totalorder %s106, %s109
      %p115 = scmp.eq.s32.totalorder %s17, 0
      %p116 = por %p114, %p115
      %p117 = scmp.ne.s32.totalorder %s106, %s109
      %p118 = scmp.eq.s32.totalorder %s22, 7
      %p119 = por %p117, %p118
      %p120 = scmp.ne.s32.totalorder %s109, %s110
      %p121 = scmp.eq.s32.totalorder %s22, 0
      %p122 = por %p120, %p121
      %p123 = scmp.ne.s32.totalorder %s109, %s110
      %p124 = scmp.eq.s32.totalorder %s23, 7
      %p125 = por %p123, %p124
      %p127 = scmp.ne.s32.totalorder %s110, %s126
      %p128 = scmp.eq.s32.totalorder %s23, 0
      %p129 = por %p127, %p128
      %p130 = scmp.le.s32.totalorder 1, %s17
      %p131 = scmp.lt.s32.totalorder %s17, 9
      %p132 = pnand %p130, %p131
      %p133 = pneg %p132
      // Predicated region
      $region9: #{tpu_custom_call.1} parent=5 // pred_check
        _
      $region10: #{tpu_custom_call.1} parent=5 // pred_check_branch
        %135 = sbr.rel (%p132) target = $region12
      $region11: #{tpu_custom_call.1} parent=5 // pred_region
        %s136 = ssub.s32 %s17, 1
      $region12: #{tpu_custom_call.1} parent=5 // pred_fallthru
        _
      %p137 = scmp.lt.s32.totalorder %s17, 8
      // Predicated region
      $region13: #{tpu_custom_call.1} parent=5 // pred_check
        %p138 = pneg %p137
      $region14: #{tpu_custom_call.1} parent=5 // pred_check_branch
        %140 = sbr.rel (%p138) target = $region16
      $region15: #{tpu_custom_call.1} parent=5 // pred_region
        // Predicated region
        $region17: #{tpu_custom_call.1} parent=15 // pred_check
          %p141 = pneg %p60
        $region18: #{tpu_custom_call.1} parent=15 // pred_check_branch
          %143 = sbr.rel (%p141) target = $region20
        $region19: #{tpu_custom_call.1} parent=15 // pred_region
          %s144 = sand.u32 %s50, 1
          %s145 = scalar_lea.sflag [#allocation6], %s144
          %s146 = sand.u32 %s50, 1
          %s147 = smul.addr %s146, 2
          %s148 = scalar_lea.vmem [#allocation5], %s147
          %s150 = ssub.s32 32, 32
          %151 = vsyncadd %s145, %s150
          %s152 = sadd.s32 %s26, %s24
          %s153 = smul.addr %s25, 4
          %s154 = sadd.s32 %s152, %s153
          %s155 = smul.addr %s154, 32
          %s156 = scalar_lea.hbm %s0, %s155
          %s158 = sshll.u32 %s148, 4
          %s159 = int_to_ptr.vmem [resolvable:$true] %s158
          %161 = dma.hbm_to_vmem [thread:$0]  %s156, 32, %s159, %s145
        $region20: #{tpu_custom_call.1} parent=15 // pred_fallthru
          _
        // Predicated region
        $region21: #{tpu_custom_call.1} parent=15 // pred_check
          %p162 = pneg %p90
        $region22: #{tpu_custom_call.1} parent=15 // pred_check_branch
          %164 = sbr.rel (%p162) target = $region24
        $region23: #{tpu_custom_call.1} parent=15 // pred_region
          %s165 = sand.u32 %s80, 1
          %s166 = scalar_lea.sflag [#allocation9], %s165
          %s167 = sand.u32 %s80, 1
          %s168 = smul.addr %s167, 2
          %s169 = scalar_lea.vmem [#allocation8], %s168
          %s171 = ssub.s32 32, 32
          %172 = vsyncadd %s166, %s171
          %s173 = sadd.s32 %s26, %s24
          %s174 = smul.addr %s25, 4
          %s175 = sadd.s32 %s173, %s174
          %s176 = smul.addr %s175, 32
          %s177 = scalar_lea.hbm %s1, %s176
          %s179 = sshll.u32 %s169, 4
          %s180 = int_to_ptr.vmem [resolvable:$true] %s179
          %182 = dma.hbm_to_vmem [thread:$0]  %s177, 32, %s180, %s166
        $region24: #{tpu_custom_call.1} parent=15 // pred_fallthru
          _
      $region16: #{tpu_custom_call.1} parent=5 // pred_fallthru
        _
      %p183 = scmp.le.s32.totalorder 1, %s17
      %p184 = scmp.lt.s32.totalorder %s17, 9
      %p185 = pnand %p183, %p184
      %p186 = pneg %p185
      // Predicated region
      $region25: #{tpu_custom_call.1} parent=5 // pred_check
        _
      $region26: #{tpu_custom_call.1} parent=5 // pred_check_branch
        %188 = sbr.rel (%p185) target = $region28
      $region27: #{tpu_custom_call.1} parent=5 // pred_region
        %s189 = ssub.s32 %s17, 1
        %s190 = sand.u32 %s53, 1
        %s191 = scalar_lea.sflag [#allocation6], %s190
        %s192 = sand.u32 %s53, 1
        %s193 = smul.addr %s192, 2
        %s194 = scalar_lea.vmem [#allocation5], %s193
        // Predicated region
        $region29: #{tpu_custom_call.1} parent=27 // pred_check
          %p195 = pneg %p66
        $region30: #{tpu_custom_call.1} parent=27 // pred_check_branch
          %197 = sbr.rel (%p195) target = $region32
        $region31: #{tpu_custom_call.1} parent=27 // pred_region
          %198 = dma.done %s191, 32
        $region32: #{tpu_custom_call.1} parent=27 // pred_fallthru
          _
        %s199 = sand.u32 %s83, 1
        %s200 = scalar_lea.sflag [#allocation9], %s199
        %s201 = sand.u32 %s83, 1
        %s202 = smul.addr %s201, 2
        %s203 = scalar_lea.vmem [#allocation8], %s202
        // Predicated region
        $region33: #{tpu_custom_call.1} parent=27 // pred_check
          %p204 = pneg %p96
        $region34: #{tpu_custom_call.1} parent=27 // pred_check_branch
          %206 = sbr.rel (%p204) target = $region36
        $region35: #{tpu_custom_call.1} parent=27 // pred_region
          %207 = dma.done %s200, 32
        $region36: #{tpu_custom_call.1} parent=27 // pred_fallthru
          _
        %s208 = sand.u32 %s53, 1
        %s209 = scalar_lea.sflag [#allocation6], %s208
        %s210 = sand.u32 %s53, 1
        %s211 = smul.addr %s210, 2
        %s212 = scalar_lea.vmem [#allocation5], %s211
        %p213 = pneg %p66
        %p214 = pneg %p63
        %s215 = sand.u32 %s83, 1
        %s216 = scalar_lea.sflag [#allocation9], %s215
        %s217 = sand.u32 %s83, 1
        %s218 = smul.addr %s217, 2
        %s219 = scalar_lea.vmem [#allocation8], %s218
        %p220 = pneg %p96
        %p221 = pneg %p93
        %p222 = pneg %p122
        %p223 = pneg %p119
        %s224 = sand.u32 %s109, 1
        %s225 = scalar_lea.sflag [#allocation7], %s224
        %s226 = sand.u32 %s109, 1
        %s227 = smul.addr %s226, 8
        %s228 = scalar_lea.vmem [#allocation10], %s227
        %p229 = scmp.eq.s32.totalorder %s28, 0
        %p230 = scmp.eq.s32.totalorder %s29, 0
        %p231 = pnand %p229, %p230
        %p232 = pneg %p231
        // Predicated region
        $region37: #{tpu_custom_call.1} parent=27 // pred_check
          _
        $region38: #{tpu_custom_call.1} parent=27 // pred_check_branch
          %234 = sbr.rel (%p231) target = $region40
        $region39: #{tpu_custom_call.1} parent=27 // pred_region
          %235 = vst [vmem:[#allocation2] sm:$0x3] 0.0
          %236 = vst [vmem:[#allocation3] sm:$0x3] 0.0
          %237 = vst [vmem:[#allocation4] sm:$0x3] 0.0
        $region40: #{tpu_custom_call.1} parent=27 // pred_fallthru
          _
        %v238 = vld [vmem:[%s194] sm:$0x3]
        %v239 = vld [vmem:[%s203] sm:$0x3]
        %v240 = vlog2.pop %v238
        %v241 = vmul.f32 %v240, 0.6931472
        %v242 = vmax.f32 %v241, -100.0
        %v243 = vsub.f32 1.0, %v238
        %v244 = vlog2.pop %v243
        %v245 = vmul.f32 %v244, 0.6931472
        %v246 = vmax.f32 %v245, -100.0
        %v247 = vmul.f32 %v239, %v242
        %v248 = vsub.f32 1.0, %v239
        %v249 = vmul.f32 %v248, %v246
        %v250 = vadd.f32 %v247, %v249
        %v251 = vsub.f32 0.0, %v250
        %v252 = vsub.f32 0.0, %v251
        %v253 = vmul.f32 %v252, 1.442695
        %v254 = vpow.pop %v253
        %v255 = vsub.f32 1.0, %v254
        %v256 = vmul.f32 %v255, %v255
        %v257 = vmul.f32 %v256, %v251
        %v258 = vld [vmem:[#allocation2] sm:$0x3]
        %v259 = vadd.f32 %v251, %v257
        %v260 = vadd.f32 %v259, 0.0
        %v261 = vadd.f32 %v258, %v260
        %262 = vst [vmem:[#allocation2] sm:$0x3] %v261
        %v263 = vld [vmem:[#allocation3] sm:$0x3]
        %v264 = vmul.f32 %v238, %v239
        %v265 = vadd.f32 %v264, 0.0
        %v266 = vadd.f32 %v263, %v265
        %267 = vst [vmem:[#allocation3] sm:$0x3] %v266
        %v268 = vld [vmem:[#allocation4] sm:$0x3]
        %v269 = vadd.f32 %v238, %v239
        %v270 = vadd.f32 %v269, 0.0
        %v271 = vadd.f32 %v268, %v270
        %272 = vst [vmem:[#allocation4] sm:$0x3] %v271
        %p273 = scmp.eq.s32.totalorder %s28, 1
        %p274 = pnand %p273, %p230
        %p275 = pneg %p274
        // Predicated region
        $region41: #{tpu_custom_call.1} parent=27 // pred_check
          _
        $region42: #{tpu_custom_call.1} parent=27 // pred_check_branch
          %277 = sbr.rel (%p274) target = $region44
        $region43: #{tpu_custom_call.1} parent=27 // pred_region
          %v278 = vld [vmem:[#allocation2] sm:$0x3]
          %vm279 = vcmask 1041408
          %v280 = vsel %vm279, %v278, 0.0
          %281 = vadd.xlane.f32.xlu0 %v280
          %v282 = vpop.xlane.xlu0 %281
          %v283 = vrot.slane %v282, 4
          %v284 = vadd.f32 %v282, %v283
          %v285 = vrot.slane %v284, 2
          %v286 = vadd.f32 %v284, %v285
          %v287 = vrot.slane %v286, 1
          %v288 = vadd.f32 %v286, %v287
          %s289 = vtos %v288
          %v290 = vld [vmem:[#allocation3] sm:$0x3]
          %v291 = vsel %vm279, %v290, 0.0
          %292 = vadd.xlane.f32.xlu0 %v291
          %v293 = vpop.xlane.xlu0 %292
          %v294 = vrot.slane %v293, 4
          %v295 = vadd.f32 %v293, %v294
          %v296 = vrot.slane %v295, 2
          %v297 = vadd.f32 %v295, %v296
          %v298 = vrot.slane %v297, 1
          %v299 = vadd.f32 %v297, %v298
          %s300 = vtos %v299
          %v301 = vld [vmem:[#allocation4] sm:$0x3]
          %v302 = vsel %vm279, %v301, 0.0
          %303 = vadd.xlane.f32.xlu0 %v302
          %v304 = vpop.xlane.xlu0 %303
          %v305 = vrot.slane %v304, 4
          %v306 = vadd.f32 %v304, %v305
          %v307 = vrot.slane %v306, 2
          %v308 = vadd.f32 %v306, %v307
          %v309 = vrot.slane %v308, 1
          %v310 = vadd.f32 %v308, %v309
          %s311 = vtos %v310
          %s312 = smul.f32 %s300, 2.0
          %s313 = sadd.f32 %s312, 1e-09
          %s314 = sadd.f32 %s311, 1e-09
          %v315 = vstv %s314
          %v316 = vrcp.pop %v315
          %s317 = vtos %v316
          %s318 = smul.f32 %s313, %s317
          %v319 = vrcp.pop 512.0
          %s320 = vtos %v319
          %s321 = smul.f32 %s289, %s320
          %s322 = ssub.f32 1.0, %s318
          %s323 = sadd.f32 %s321, %s322
          %v324 = vstv %s323
          %325 = vst [vmem:[%s228] sm:$0xff] %v324
        $region44: #{tpu_custom_call.1} parent=27 // pred_fallthru
          _
        %s326 = sand.u32 %s109, 1
        %s327 = scalar_lea.sflag [#allocation7], %s326
        %s328 = sand.u32 %s109, 1
        %s329 = smul.addr %s328, 8
        %s330 = scalar_lea.vmem [#allocation10], %s329
        // Predicated region
        $region45: #{tpu_custom_call.1} parent=27 // pred_check
          %p331 = pneg %p119
        $region46: #{tpu_custom_call.1} parent=27 // pred_check_branch
          %333 = sbr.rel (%p331) target = $region48
        $region47: #{tpu_custom_call.1} parent=27 // pred_region
          %s335 = ssub.s32 128, 128
          %336 = vsyncadd %s327, %s335
          %s337 = smul.addr %s27, 128
          %s338 = scalar_lea.hbm %s2, %s337
          %s340 = sshll.u32 %s330, 4
          %s341 = int_to_ptr.vmem [resolvable:$true] %s340
          %343 = dma.vmem_to_hbm [thread:$0]  %s341, 128, %s338, %s327
        $region48: #{tpu_custom_call.1} parent=27 // pred_fallthru
          _
      $region28: #{tpu_custom_call.1} parent=5 // pred_fallthru
        _
      %p344 = scmp.le.s32.totalorder 2, %s17
      // Predicated region
      $region49: #{tpu_custom_call.1} parent=5 // pred_check
        %p345 = pneg %p344
      $region50: #{tpu_custom_call.1} parent=5 // pred_check_branch
        %347 = sbr.rel (%p345) target = $region52
      $region51: #{tpu_custom_call.1} parent=5 // pred_region
        %s348 = ssub.s32 %s17, 2
        // Predicated region
        $region53: #{tpu_custom_call.1} parent=51 // pred_check
          %p349 = pneg %p125
        $region54: #{tpu_custom_call.1} parent=51 // pred_check_branch
          %351 = sbr.rel (%p349) target = $region56
        $region55: #{tpu_custom_call.1} parent=51 // pred_region
          %s352 = sand.u32 %s110, 1
          %s353 = scalar_lea.sflag [#allocation7], %s352
          %s354 = sand.u32 %s110, 1
          %s355 = smul.addr %s354, 8
          %s356 = scalar_lea.vmem [#allocation10], %s355
          %357 = dma.done %s353, 128
        $region56: #{tpu_custom_call.1} parent=51 // pred_fallthru
          _
      $region52: #{tpu_custom_call.1} parent=5 // pred_fallthru
        _
    $region6: #{tpu_custom_call.1} parent=1 // loop_footer
      %s21 = sadd.s32 1, %s17
    $region7: #{tpu_custom_call.1} parent=1 // loop_footer_branch
      %16 = sbr.rel target = $region3
    $region8: #{tpu_custom_call.1} parent=1 // loop_exit
      _
    %358 = vsyncpa [#allocation6], 1
    %s359 = scalar_lea.sflag [#allocation6], 1
    %360 = vsyncpa %s359, 1
    %361 = vsyncpa [#allocation9], 1
    %s362 = scalar_lea.sflag [#allocation9], 1
    %363 = vsyncpa %s362, 1
    %364 = vsyncpa [#allocation7], 1
    %s365 = scalar_lea.sflag [#allocation7], 1
    %366 = vsyncpa %s365, 1

</llo_original>
